<compile_context>
chip_gen: v6e
topology: v6e:2x2x1
jax: 0.10.0
libtpu: 0.0.40
codegen_flags: <defaults>
</compile_context>

<pallas_src>
import functools
import math

import jax
import jax.numpy as jnp
import numpy as np
from jax.experimental import pallas as pl
from jax.experimental.pallas import tpu as pltpu


_MiB = 1024 * 1024


def _vmem_limit_bytes():
    """Generation-aware scoped-VMEM limit: 3/4 of physical VMEM, <= 96 MiB.

    Defaults conservatively to v7x's 64 MiB per-TC VMEM if the query fails,
    so the derived budget is safe on every generation.
    """
    physical = 64 * _MiB
    try:
        info = pltpu.get_tpu_info()
        cap = getattr(info, "vmem_capacity_bytes", None)
        if cap:
            physical = int(cap)
    except Exception:
        pass
    return int(min(physical * 3 // 4, 96 * _MiB))


def _plan_flat_layout(total, quantum):
    """Pick (lane, rows, pad) with total+pad == rows*lane, lane % 128 == 0,
    rows % quantum == 0.  Prefers no padding when the size allows it."""
    for lane in (2048, 1024, 512, 256, 128):
        if total % lane == 0 and (total // lane) % quantum == 0:
            return lane, total // lane, 0
    # Fallback: pad flattened array up to a dense, tileable size.
    lane = 512
    unit = lane * quantum
    padded = ((total + unit - 1) // unit) * unit
    return lane, padded // lane, padded - total


def _pick_block_rows(rows, lane, quantum, itemsize, budget_bytes):
    """Largest multiple of `quantum` dividing `rows`, with the block under
    `budget_bytes`, preferring >= 2 grid steps (megacore sharding)."""
    cap = (budget_bytes // itemsize) // lane
    cap = max(quantum, (cap // quantum) * quantum)
    min_steps = 2 if rows >= 2 * quantum else 1
    best = quantum
    sb = quantum
    limit = min(rows, cap)
    while sb <= limit:
        if rows % sb == 0 and (rows // sb) >= min_steps:
            best = sb
        sb += quantum
    return best


# ----------------------------- kernels --------------------------------------


def _add_kernel(*refs, acc_dtype):
    """refs = (x_0, ..., x_{k-1}, out). All blocks have identical 2D shape."""
    out_ref = refs[-1]
    in_refs = refs[:-1]
    acc = in_refs[0][...].astype(acc_dtype)
    for r in in_refs[1:]:
        acc = acc + r[...].astype(acc_dtype)
    out_ref[...] = acc.astype(out_ref.dtype)


def _cat_dma_kernel(*refs, lane_sizes):
    """refs = (x_0, ..., x_{k-1}, out, sem). All refs live in HBM (pl.ANY).

    Issues one HBM->HBM DMA per input into the output's channel slab; all
    copies run concurrently on their own DMA semaphore."""
    k = len(lane_sizes)
    in_refs = refs[:k]
    out_ref = refs[k]
    sem = refs[k + 1]
    copies = []
    off = 0
    for i, f in enumerate(lane_sizes):
        cp = pltpu.make_async_copy(in_refs[i],
                                   out_ref.at[:, off:off + f],
                                   sem.at[i])
        cp.start()
        copies.append(cp)
        off += f
    for cp in copies:
        cp.wait()


# ----------------------------- wrappers -------------------------------------


def merge_add(xs):
    """sum(x) over a list of (N, C, H, W) arrays (same shape)."""
    xs = list(xs)
    if len(xs) == 1:
        return xs[0]
    shape = xs[0].shape
    for x in xs:
        if x.shape != shape:
            raise ValueError("'add' merge requires identical shapes")

    out_dtype = jnp.result_type(*xs)
    xs = [x.astype(out_dtype) for x in xs]
    # Accumulate in f32 for sub-f32 floats; natively for f32 / ints.
    if jnp.issubdtype(out_dtype, jnp.floating) and out_dtype != jnp.float32:
        acc_dtype = jnp.float32
    else:
        acc_dtype = out_dtype

    k = len(xs)
    itemsize = jnp.dtype(out_dtype).itemsize
    quantum = max(8, 32 // itemsize)           # 8 f32 / 16 bf16 / 32 int8
    total = math.prod(shape)

    vmem_limit = _vmem_limit_bytes()
    # Per-operand per-buffer byte budget: double-buffering keeps 2*(k+1)
    # blocks live.  ~4 MiB/operand reaches the HBM-roofline plateau on every
    # generation while fitting v7x's smaller VMEM.
    budget = int(0.8 * vmem_limit) // (2 * (k + 1))
    budget = min(max(budget, 128 * 128 * itemsize), 4 * _MiB)

    lane, rows, pad = _plan_flat_layout(total, quantum)
    sb = _pick_block_rows(rows, lane, quantum, itemsize, budget)

    def to_flat(x):
        f = x.reshape(-1)
        if pad:
            f = jnp.pad(f, (0, pad))
        return f.reshape(rows, lane)

    flat = [to_flat(x) for x in xs]
    grid = (rows // sb,)
    spec = pl.BlockSpec((sb, lane), lambda i: (i, 0))
    cost = pl.CostEstimate(
        flops=(k - 1) * total,
        transcendentals=0,
        bytes_accessed=(k + 1) * total * itemsize,
    )

    # TODO(synk): if a profile shows exposed input DMA for k >= 4, add
    # pipeline_mode=pl.Buffered(3) on the input specs.
    out_flat = pl.pallas_call(
        functools.partial(_add_kernel, acc_dtype=acc_dtype),
        out_shape=jax.ShapeDtypeStruct((rows, lane), out_dtype),
        grid=grid,
        in_specs=[spec] * k,
        out_specs=spec,
        compiler_params=pltpu.CompilerParams(
            dimension_semantics=("parallel",),
            vmem_limit_bytes=int(vmem_limit)),
        cost_estimate=cost,
    )(*flat)

    out = out_flat.reshape(-1)
    if pad:
        out = out[:total]
    return out.reshape(shape)


def merge_cat(xs):
    """torch.cat(x, dim=1) over a list of (N, C_i, H, W) arrays."""
    xs = list(xs)
    if len(xs) == 1:
        return xs[0]
    N, _, H, W = xs[0].shape
    for x in xs:
        if x.ndim != 4 or x.shape[0] != N or x.shape[2] != H or x.shape[3] != W:
            raise ValueError("'cat' merge requires matching N, H, W")

    out_dtype = jnp.result_type(*xs)
    xs = [x.astype(out_dtype) for x in xs]

    channels = [int(x.shape[1]) for x in xs]
    c_total = sum(channels)
    lane_sizes = tuple(c * H * W for c in channels)
    f_total = c_total * H * W
    k = len(xs)

    # NCHW is per-batch contiguous in channel-major order, so channel-concat
    # is exactly a per-row offset copy in the flattened (N, C*H*W) view.
    flat = [x.reshape(N, f) for x, f in zip(xs, lane_sizes)]

    itemsize = jnp.dtype(out_dtype).itemsize
    cost = pl.CostEstimate(
        flops=0,
        transcendentals=0,
        bytes_accessed=2 * N * f_total * itemsize,
    )

    out_flat = pl.pallas_call(
        functools.partial(_cat_dma_kernel, lane_sizes=lane_sizes),
        out_shape=jax.ShapeDtypeStruct((N, f_total), out_dtype),
        in_specs=[pl.BlockSpec(memory_space=pl.ANY)] * k,
        out_specs=pl.BlockSpec(memory_space=pl.ANY),
        scratch_shapes=[pltpu.SemaphoreType.DMA((k,))],
        cost_estimate=cost,
    )(*flat)
    return out_flat.reshape(N, c_total, H, W)


class MergeBlock:
    """JAX/Pallas equivalent of the PyTorch MergeBlock."""

    def __init__(self, policy):
        if policy not in ["add", "cat"]:
            raise ValueError(
                "`merge_policy` must be one of: ['add', 'cat'], got {}".format(
                    policy))
        self.policy = policy

    def __call__(self, x):
        if self.policy == "add":
            return merge_add(list(x))
        elif self.policy == "cat":
            return merge_cat(list(x))
        else:
            raise ValueError(
                "`merge_policy` must be one of: ['add', 'cat'], got {}".format(
                    self.policy))


# ------------------------------ main ----------------------------------------


if __name__ == "__main__":
    key = jax.random.PRNGKey(0)
    k1, k2, k3 = jax.random.split(key, 3)

    # Small FPN-like feature maps: batch=2, channels=4, spatial=16x16.
    x0 = jax.random.normal(k1, (2, 4, 16, 16), dtype=jnp.float32)
    x1 = jax.random.normal(k2, (2, 4, 16, 16), dtype=jnp.float32)
    x2 = jax.random.normal(k3, (2, 4, 16, 16), dtype=jnp.float32)
    xs = [x0, x1, x2]

    # policy = 'add'
    add_block = MergeBlock("add")
    out_add = jax.block_until_ready(add_block(xs))
    ref_add = x0 + x1 + x2
    assert out_add.shape == (2, 4, 16, 16)
    np.testing.assert_allclose(np.asarray(out_add), np.asarray(ref_add),
                               rtol=1e-6, atol=1e-6)

    # policy = 'cat'
    cat_block = MergeBlock("cat")
    out_cat = jax.block_until_ready(cat_block(xs))
    ref_cat = jnp.concatenate(xs, axis=1)
    assert out_cat.shape == (2, 12, 16, 16)
    np.testing.assert_allclose(np.asarray(out_cat), np.asarray(ref_cat),
                               rtol=0, atol=0)

    print("KERNEL_OK")
</pallas_src>

<mosaic_0001>
module attributes {stable_mosaic.version = 11 : i64} {
  func.func @_add_kernel(%arg0: i32, %arg1: memref<8x256xf32, #tpu.memory_space<vmem>>, %arg2: memref<8x256xf32, #tpu.memory_space<vmem>>, %arg3: memref<8x256xf32, #tpu.memory_space<vmem>>, %arg4: memref<8x256xf32, #tpu.memory_space<vmem>>) attributes {dimension_semantics = [#tpu.dimension_semantics<parallel>], iteration_bounds = array<i64: 1>, scalar_prefetch = 0 : i64, scratch_operands = 0 : i64, tpu.core_type = #tpu.core_type<tc>, window_params = [{transform_indices = @transform_0, window_bounds = array<i64: 8, 256>}, {transform_indices = @transform_1, window_bounds = array<i64: 8, 256>}, {transform_indices = @transform_2, window_bounds = array<i64: 8, 256>}, {transform_indices = @transform_3, window_bounds = array<i64: 8, 256>}]} {
    %c0 = arith.constant 0 : index
    %c0_0 = arith.constant 0 : index
    %0 = vector.load %arg1[%c0, %c0_0] : memref<8x256xf32, #tpu.memory_space<vmem>>, vector<8x256xf32>
    %c0_1 = arith.constant 0 : index
    %c0_2 = arith.constant 0 : index
    %1 = vector.load %arg2[%c0_1, %c0_2] : memref<8x256xf32, #tpu.memory_space<vmem>>, vector<8x256xf32>
    %2 = arith.addf %0, %1 : vector<8x256xf32>
    %c0_3 = arith.constant 0 : index
    %c0_4 = arith.constant 0 : index
    %3 = vector.load %arg3[%c0_3, %c0_4] : memref<8x256xf32, #tpu.memory_space<vmem>>, vector<8x256xf32>
    %4 = arith.addf %2, %3 : vector<8x256xf32>
    %c0_5 = arith.constant 0 : index
    %c0_6 = arith.constant 0 : index
    %5 = vector.load %arg4[%c0_5, %c0_6] : memref<8x256xf32, #tpu.memory_space<vmem>>, vector<8x256xf32>
    tpu.vector_store %arg4[%c0_5, %c0_6], %4 {strides = array<i32>} : memref<8x256xf32, #tpu.memory_space<vmem>>, vector<8x256xf32>,
    return
  }
  func.func @transform_0(%arg0: i32) -> (i32, i32) {
    %c0_i32 = arith.constant 0 : i32
    %c0_i32_0 = arith.constant 0 : i32
    return %arg0, %c0_i32 : i32, i32
  }
  func.func @transform_1(%arg0: i32) -> (i32, i32) {
    %c0_i32 = arith.constant 0 : i32
    %c0_i32_0 = arith.constant 0 : i32
    return %arg0, %c0_i32 : i32, i32
  }
  func.func @transform_2(%arg0: i32) -> (i32, i32) {
    %c0_i32 = arith.constant 0 : i32
    %c0_i32_0 = arith.constant 0 : i32
    return %arg0, %c0_i32 : i32, i32
  }
  func.func @transform_3(%arg0: i32) -> (i32, i32) {
    %c0_i32 = arith.constant 0 : i32
    %c0_i32_0 = arith.constant 0 : i32
    return %arg0, %c0_i32 : i32, i32
  }
}

</mosaic_0001>

<llo_original>
// kernel: tpu_custom_call.1
$region0: #{tpu_custom_call.1}
  #allocation0 [shape = 'u32[]', space=smem, size = 0x4, offset = 0x4, fixed_abs, tag = 'smem constant byte address 0x4 - core index']
  #allocation1 [shape = 'u32[144,128]{1,0:T(1,128)}', space=vmem, size = 0x12000, scoped, tag = 'internal scratch']
  %s0 = inlined_call_operand.hbm [shape: f32[8,256], index: 0, kind: input, shape index: {}]
  %s1 = inlined_call_operand.hbm [shape: f32[8,256], index: 1, kind: input, shape index: {}]
  %s2 = inlined_call_operand.hbm [shape: f32[8,256], index: 2, kind: input, shape index: {}]
  %s3 = inlined_call_operand.hbm [shape: f32[8,256], index: 3, kind: output, shape index: {}]
  %s4 = sld [smem:[#allocation0]]
  $region34: #{tpu_custom_call.1} parent=0
    _
  %s6 = ssub.s32 1, %s4
  %s7 = scalar_select 0, %s6, %s4
  $region1: #{tpu_custom_call.1} parent=0
    #allocation2 [shape = 'u8[8192]{0}', space=vmem, size = 0x2000, scoped, tag = 'input window, operand 0, single buffered']
    #allocation3 [shape = 's32[1]{0}', space=sflag, size = 0x4, scoped, tag = 'scoped memory for tpu_custom_call.1']
    #allocation4 [shape = 's32[1]{0}', space=sflag, size = 0x4, scoped, tag = 'scoped memory for tpu_custom_call.1']
    #allocation5 [shape = 'u8[8192]{0}', space=vmem, size = 0x2000, scoped, tag = 'input window, operand 1, single buffered']
    #allocation6 [shape = 's32[1]{0}', space=sflag, size = 0x4, scoped, tag = 'scoped memory for tpu_custom_call.1']
    #allocation7 [shape = 'u8[8192]{0}', space=vmem, size = 0x2000, scoped, tag = 'input window, operand 2, single buffered']
    #allocation8 [shape = 'u8[8192]{0}', space=vmem, size = 0x2000, scoped, tag = 'output window, operand 0, single buffered']
    %8 = vsyncpa [#allocation3], 0
    %9 = vsyncpa [#allocation6], 0
    %10 = vsyncpa [#allocation4], 0
    // Predicated region
    $region2: #{tpu_custom_call.1} parent=1 // pred_check
      _
    $region3: #{tpu_custom_call.1} parent=1 // pred_check_branch
      %12 = sbr.rel (0) target = $region5
    $region4: #{tpu_custom_call.1} parent=1 // pred_region
      %s14 = ssub.s32 256, 256
      %15 = vsyncadd [#allocation3], %s14
      %s17 = sshll.u32 [#allocation2], 4
      %s18 = int_to_ptr.vmem [resolvable:$true] %s17
      %20 = dma.hbm_to_vmem [thread:$0]  %s0, 256, %s18, [#allocation3]
    $region5: #{tpu_custom_call.1} parent=1 // pred_fallthru
      _
    // Predicated region
    $region6: #{tpu_custom_call.1} parent=1 // pred_check
      _
    $region7: #{tpu_custom_call.1} parent=1 // pred_check_branch
      %22 = sbr.rel (0) target = $region9
    $region8: #{tpu_custom_call.1} parent=1 // pred_region
      %s24 = ssub.s32 256, 256
      %25 = vsyncadd [#allocation6], %s24
      %s27 = sshll.u32 [#allocation5], 4
      %s28 = int_to_ptr.vmem [resolvable:$true] %s27
      %30 = dma.hbm_to_vmem [thread:$0]  %s1, 256, %s28, [#allocation6]
    $region9: #{tpu_custom_call.1} parent=1 // pred_fallthru
      _
    // Predicated region
    $region10: #{tpu_custom_call.1} parent=1 // pred_check
      _
    $region11: #{tpu_custom_call.1} parent=1 // pred_check_branch
      %32 = sbr.rel (0) target = $region13
    $region12: #{tpu_custom_call.1} parent=1 // pred_region
      %s34 = ssub.s32 256, 256
      %35 = vsyncadd [#allocation6], %s34
      %s37 = sshll.u32 [#allocation7], 4
      %s38 = int_to_ptr.vmem [resolvable:$true] %s37
      %40 = dma.hbm_to_vmem [thread:$0]  %s2, 256, %s38, [#allocation6]
    $region13: #{tpu_custom_call.1} parent=1 // pred_fallthru
      _
    // Predicated region
    $region14: #{tpu_custom_call.1} parent=1 // pred_check
      _
    $region15: #{tpu_custom_call.1} parent=1 // pred_check_branch
      %42 = sbr.rel (0) target = $region17
    $region16: #{tpu_custom_call.1} parent=1 // pred_region
      %43 = dma.done [#allocation3], 256
    $region17: #{tpu_custom_call.1} parent=1 // pred_fallthru
      _
    // Predicated region
    $region18: #{tpu_custom_call.1} parent=1 // pred_check
      _
    $region19: #{tpu_custom_call.1} parent=1 // pred_check_branch
      %45 = sbr.rel (0) target = $region21
    $region20: #{tpu_custom_call.1} parent=1 // pred_region
      %46 = dma.done [#allocation6], 256
    $region21: #{tpu_custom_call.1} parent=1 // pred_fallthru
      _
    // Predicated region
    $region22: #{tpu_custom_call.1} parent=1 // pred_check
      _
    $region23: #{tpu_custom_call.1} parent=1 // pred_check_branch
      %48 = sbr.rel (0) target = $region25
    $region24: #{tpu_custom_call.1} parent=1 // pred_region
      %49 = dma.done [#allocation6], 256
    $region25: #{tpu_custom_call.1} parent=1 // pred_fallthru
      _
    %v50 = vld [vmem:[#allocation2] sm:$0xff]
    %v51 = vld [vmem:[#allocation2 + $0x8] sm:$0xff]
    %v52 = vld [vmem:[#allocation5] sm:$0xff]
    %v53 = vld [vmem:[#allocation5 + $0x8] sm:$0xff]
    %v54 = vadd.f32 %v50, %v52
    %v55 = vadd.f32 %v51, %v53
    %v56 = vld [vmem:[#allocation7] sm:$0xff]
    %v57 = vld [vmem:[#allocation7 + $0x8] sm:$0xff]
    %v58 = vadd.f32 %v54, %v56
    %v59 = vadd.f32 %v55, %v57
    %60 = vst [vmem:[#allocation8] sm:$0xff] %v58
    %61 = vst [vmem:[#allocation8 + $0x8] sm:$0xff] %v59
    // Predicated region
    $region26: #{tpu_custom_call.1} parent=1 // pred_check
      _
    $region27: #{tpu_custom_call.1} parent=1 // pred_check_branch
      %63 = sbr.rel (0) target = $region29
    $region28: #{tpu_custom_call.1} parent=1 // pred_region
      %s65 = ssub.s32 256, 256
      %66 = vsyncadd [#allocation4], %s65
      %s68 = sshll.u32 [#allocation8], 4
      %s69 = int_to_ptr.vmem [resolvable:$true] %s68
      %71 = dma.vmem_to_hbm [thread:$0]  %s69, 256, %s3, [#allocation4]
    $region29: #{tpu_custom_call.1} parent=1 // pred_fallthru
      _
    // Predicated region
    $region30: #{tpu_custom_call.1} parent=1 // pred_check
      _
    $region31: #{tpu_custom_call.1} parent=1 // pred_check_branch
      %73 = sbr.rel (0) target = $region33
    $region32: #{tpu_custom_call.1} parent=1 // pred_region
      %74 = dma.done [#allocation4], 256
    $region33: #{tpu_custom_call.1} parent=1 // pred_fallthru
      _
    %75 = vsyncpa [#allocation3], 1
    %76 = vsyncpa [#allocation6], 1
    %77 = vsyncpa [#allocation4], 1

</llo_original>
